<compile_context>
chip_gen: v7x
topology: tpu7x:2x2x1
jax: 0.10.0
libtpu: 0.0.40
codegen_flags: <defaults>
</compile_context>

<pallas_src>
import functools

import jax
import jax.numpy as jnp
from jax.experimental import pallas as pl
from jax.experimental.pallas import tpu as pltpu


def _round_up(x: int, m: int) -> int:
    return (x + m - 1) // m * m


def _mlp_kernel(*refs, depth: int, activation: str):
    """One batch tile of the full MLP forward.

    refs = (x_t, W_0, b_0, ..., W_{depth-1}, b_{depth-1}, w_out, b_out, out)
      x_t   : (in_pad,  tile_b)  compute dtype (bf16 by default), batch on the lane axis
      W_i   : (out_pad, in_pad)  compute dtype, VMEM-resident across the whole grid
      b_i   : (out_pad, 1)       f32
      w_out : (w_pad, 1)         f32 (output-layer weight as a column)
      b_out : (1, 1)             f32 scalar in SMEM
      out   : (1, tile_b)        f32 lane-dense sigmoid probabilities
    """
    x_ref = refs[0]
    out_ref = refs[-1]
    b_out_ref = refs[-2]
    w_out_ref = refs[-3]
    layer_refs = refs[1:1 + 2 * depth]

    cdt = x_ref.dtype                        # matmul operand dtype (bf16 on v6e/v7x)
    h = x_ref[...]                           # (in_pad, tile_b)
    z = None
    for li in range(depth):
        w = layer_refs[2 * li][...]          # (out_pad, in_pad)
        b = layer_refs[2 * li + 1][...]      # (out_pad, 1) f32, broadcasts over lanes
        # MXU matmul with f32 accumulation; bias add + activation stay in f32 (VPU/EUP),
        # which also keeps the elementwise path f32-only on v5e (no bf16 VPU there).
        z = jnp.dot(w, h, preferred_element_type=jnp.float32) + b
        z = jnp.tanh(z) if activation == "tanh" else jnp.maximum(z, 0.0)
        h = z.astype(cdt)                    # low-precision operands for the next matmul
    # Output layer (width -> 1): VPU multiply + sublane reduction instead of an N=1 MXU
    # matmul; the result is already a lane-dense (1, tile_b) row — no relayout needed.
    r = jnp.sum(z * w_out_ref[...], axis=0, keepdims=True) + b_out_ref[0, 0]
    r = jnp.clip(r, -40.0, 40.0)             # keep exp finite for the approx reciprocal
    # sigmoid: exp on the EUP, approximate reciprocal also on the EUP (frees VALU slots)
    out_ref[...] = pl.reciprocal(1.0 + jnp.exp(-r), approx=True)


def mlp_forward(x, params, activation="relu", *, tile_batch=512,
                compute_dtype=jnp.bfloat16):
    """params: PyTorch-layout list [(W0,b0), ..., (W_out,b_out)], W:(out,in), b:(out,).

    Grid over padded batch tiles (lane axis = batch).  Weights/biases use a constant
    index_map so they stay VMEM-resident across the whole grid; the batch axis is marked
    "parallel" so v7x shards it across both TensorCores.  Resident weight footprint is
    depth * w_pad^2 * 2 B (bf16) — for larger widths budget against v7x's 32 MiB scoped
    VMEM default (raise vmem_limit_bytes or tile the width if you scale it up).
    """
    depth = len(params) - 1
    assert depth >= 1, "need at least one hidden layer"
    batch, input_dim = x.shape
    width = params[0][0].shape[0]

    in_pad = _round_up(input_dim, 128)
    w_pad = _round_up(width, 128)
    tb = min(_round_up(tile_batch, 128), _round_up(batch, 128))
    batch_pad = _round_up(batch, tb)
    num_tiles = batch_pad // tb

    # Transpose + zero-pad the input: (batch, in) -> (in_pad, batch_pad), compute dtype.
    x_t = jnp.zeros((in_pad, batch_pad), compute_dtype)
    x_t = x_t.at[:input_dim, :batch].set(x.T.astype(compute_dtype))

    flat_inputs = [x_t]
    in_specs = [pl.BlockSpec((in_pad, tb), lambda i: (0, i))]

    dims = [in_pad] + [w_pad] * depth
    for li in range(depth):
        W, b = params[li]
        out_d, in_d = W.shape
        Wp = jnp.zeros((dims[li + 1], dims[li]), compute_dtype)
        Wp = Wp.at[:out_d, :in_d].set(W.astype(compute_dtype))
        bp = jnp.zeros((dims[li + 1], 1), jnp.float32)
        bp = bp.at[:out_d, 0].set(b.astype(jnp.float32))
        flat_inputs += [Wp, bp]
        in_specs += [
            pl.BlockSpec((dims[li + 1], dims[li]), lambda i: (0, 0)),  # resident weight
            pl.BlockSpec((dims[li + 1], 1), lambda i: (0, 0)),         # resident bias
        ]

    W_out, b_out = params[-1]                       # (1, width), (1,)
    w_out_col = jnp.zeros((w_pad, 1), jnp.float32)
    w_out_col = w_out_col.at[:width, 0].set(W_out[0].astype(jnp.float32))
    b_out_s = jnp.asarray(b_out, jnp.float32).reshape(1, 1)
    flat_inputs += [w_out_col, b_out_s]
    in_specs += [
        pl.BlockSpec((w_pad, 1), lambda i: (0, 0)),
        pl.BlockSpec(memory_space=pltpu.MemorySpace.SMEM),   # scalar output bias
    ]

    out_shape = jax.ShapeDtypeStruct((1, batch_pad), jnp.float32)
    out_spec = pl.BlockSpec((1, tb), lambda i: (0, i))

    kernel = functools.partial(_mlp_kernel, depth=depth, activation=activation)

    y = pl.pallas_call(
        kernel,
        grid=(num_tiles,),
        in_specs=in_specs,
        out_specs=out_spec,
        out_shape=out_shape,
        compiler_params=pltpu.CompilerParams(dimension_semantics=("parallel",)),
    )(*flat_inputs)

    # Strip padding and return in the PyTorch (batch, 1) shape.
    return y[0, :batch].reshape(batch, 1)


def init_params(key, input_dim, depth, width, activation="relu"):
    """PyTorch-layout init mirroring TorchNeuralNetwork.__init__.

    Hidden weights: kaiming_uniform (relu gain) or xavier_uniform; biases and the
    output layer use the default nn.Linear uniform(+-1/sqrt(fan_in)) init.
    """
    params = []
    dims = [input_dim] + [width] * depth
    for i in range(depth):
        fan_in, fan_out = dims[i], dims[i + 1]
        key, kw, kb = jax.random.split(key, 3)
        if activation == "tanh":
            bound = jnp.sqrt(6.0 / (fan_in + fan_out))   # xavier_uniform
        else:
            bound = jnp.sqrt(6.0 / fan_in)               # kaiming_uniform, relu gain
        W = jax.random.uniform(kw, (fan_out, fan_in), jnp.float32, -bound, bound)
        b_bound = 1.0 / jnp.sqrt(fan_in)
        b = jax.random.uniform(kb, (fan_out,), jnp.float32, -b_bound, b_bound)
        params.append((W, b))
    key, kw, kb = jax.random.split(key, 3)
    wb = 1.0 / jnp.sqrt(width)
    W_out = jax.random.uniform(kw, (1, width), jnp.float32, -wb, wb)
    b_out = jax.random.uniform(kb, (1,), jnp.float32, -wb, wb)
    params.append((W_out, b_out))
    return params


def _reference_forward(x, params, activation="relu", compute_dtype=jnp.bfloat16):
    """Pure-JAX reference with the same bf16-operand / f32-accumulate matmuls."""
    h = x
    n = len(params)
    for i, (W, b) in enumerate(params):
        if i < n - 1:
            h = jnp.dot(h.astype(compute_dtype), W.T.astype(compute_dtype),
                        preferred_element_type=jnp.float32) + b[None, :]
            h = jnp.tanh(h) if activation == "tanh" else jnp.maximum(h, 0.0)
        else:
            h = h @ W.T + b[None, :]   # output layer kept in f32 (matches the kernel)
    return jax.nn.sigmoid(h)


# TODO(synk): train_model / predict (Adam, BCELoss, DataLoader) are host-side training
# utilities, not part of the forward pass — only forward() is implemented as a kernel.

if __name__ == "__main__":
    key = jax.random.PRNGKey(0)
    batch, input_dim, depth, width = 8, 16, 3, 32
    activation = "relu"

    kx, kp = jax.random.split(key)
    x = jax.random.normal(kx, (batch, input_dim), jnp.float32)
    params = init_params(kp, input_dim, depth, width, activation)

    out = mlp_forward(x, params, activation)
    out = jax.block_until_ready(out)

    ref = _reference_forward(x, params, activation)
    assert out.shape == (batch, 1)
    max_err = float(jnp.max(jnp.abs(out - ref)))
    assert max_err < 1e-2, (max_err, out, ref)   # approx-reciprocal sigmoid tolerance

    print("KERNEL_OK")
</pallas_src>

<mosaic_0001>
module attributes {stable_mosaic.version = 11 : i64} {
  func.func @_mlp_kernel(%arg0: i32, %arg1: memref<128x128xbf16, #tpu.memory_space<vmem>>, %arg2: memref<128x128xbf16, #tpu.memory_space<vmem>>, %arg3: memref<128x1xf32, #tpu.memory_space<vmem>>, %arg4: memref<128x128xbf16, #tpu.memory_space<vmem>>, %arg5: memref<128x1xf32, #tpu.memory_space<vmem>>, %arg6: memref<128x128xbf16, #tpu.memory_space<vmem>>, %arg7: memref<128x1xf32, #tpu.memory_space<vmem>>, %arg8: memref<128x1xf32, #tpu.memory_space<vmem>>, %arg9: memref<1x1xf32, #tpu.memory_space<smem>>, %arg10: memref<1x128xf32, #tpu.memory_space<vmem>>) attributes {dimension_semantics = [#tpu.dimension_semantics<parallel>], iteration_bounds = array<i64: 1>, scalar_prefetch = 0 : i64, scratch_operands = 0 : i64, tpu.core_type = #tpu.core_type<tc>, window_params = [{transform_indices = @transform_0, window_bounds = array<i64: 128, 128>}, {pipeline_mode = #tpu.pipeline_mode<synchronous>, transform_indices = @transform_1, window_bounds = array<i64: 128, 128>}, {pipeline_mode = #tpu.pipeline_mode<synchronous>, transform_indices = @transform_2, window_bounds = array<i64: 128, 1>}, {pipeline_mode = #tpu.pipeline_mode<synchronous>, transform_indices = @transform_3, window_bounds = array<i64: 128, 128>}, {pipeline_mode = #tpu.pipeline_mode<synchronous>, transform_indices = @transform_4, window_bounds = array<i64: 128, 1>}, {pipeline_mode = #tpu.pipeline_mode<synchronous>, transform_indices = @transform_5, window_bounds = array<i64: 128, 128>}, {pipeline_mode = #tpu.pipeline_mode<synchronous>, transform_indices = @transform_6, window_bounds = array<i64: 128, 1>}, {pipeline_mode = #tpu.pipeline_mode<synchronous>, transform_indices = @transform_7, window_bounds = array<i64: 128, 1>}, {transform_indices = @transform_8, window_bounds = array<i64: 1, 1>}, {transform_indices = @transform_9, window_bounds = array<i64: 1, 128>}]} {
    %c0 = arith.constant 0 : index
    %c0_0 = arith.constant 0 : index
    %0 = vector.load %arg1[%c0, %c0_0] : memref<128x128xbf16, #tpu.memory_space<vmem>>, vector<128x128xbf16>
    %c0_1 = arith.constant 0 : index
    %c0_2 = arith.constant 0 : index
    %1 = vector.load %arg2[%c0_1, %c0_2] : memref<128x128xbf16, #tpu.memory_space<vmem>>, vector<128x128xbf16>
    %c0_3 = arith.constant 0 : index
    %c0_4 = arith.constant 0 : index
    %2 = vector.load %arg3[%c0_3, %c0_4] : memref<128x1xf32, #tpu.memory_space<vmem>>, vector<128x1xf32>
    %cst = arith.constant dense<0.000000e+00> : vector<128x128xf32>
    %3 = tpu.matmul %1, %0, %cst {dimension_numbers = #tpu.dot_dimension_numbers<[1], [0], [0], [1], [0, 0, 1, 1], [], []>} : vector<128x128xbf16>, vector<128x128xbf16>, vector<128x128xf32> -> vector<128x128xf32>
    %4 = vector.broadcast %2 : vector<128x1xf32> to vector<128x128xf32>
    %5 = arith.addf %3, %4 : vector<128x128xf32>
    %cst_5 = arith.constant 0.000000e+00 : f32
    %6 = vector.broadcast %cst_5 : f32 to vector<128x128xf32>
    %7 = arith.maximumf %5, %6 : vector<128x128xf32>
    %8 = arith.truncf %7 : vector<128x128xf32> to vector<128x128xbf16>
    %c0_6 = arith.constant 0 : index
    %c0_7 = arith.constant 0 : index
    %9 = vector.load %arg4[%c0_6, %c0_7] : memref<128x128xbf16, #tpu.memory_space<vmem>>, vector<128x128xbf16>
    %c0_8 = arith.constant 0 : index
    %c0_9 = arith.constant 0 : index
    %10 = vector.load %arg5[%c0_8, %c0_9] : memref<128x1xf32, #tpu.memory_space<vmem>>, vector<128x1xf32>
    %cst_10 = arith.constant dense<0.000000e+00> : vector<128x128xf32>
    %11 = tpu.matmul %9, %8, %cst_10 {dimension_numbers = #tpu.dot_dimension_numbers<[1], [0], [0], [1], [0, 0, 1, 1], [], []>} : vector<128x128xbf16>, vector<128x128xbf16>, vector<128x128xf32> -> vector<128x128xf32>
    %12 = vector.broadcast %10 : vector<128x1xf32> to vector<128x128xf32>
    %13 = arith.addf %11, %12 : vector<128x128xf32>
    %cst_11 = arith.constant 0.000000e+00 : f32
    %14 = vector.broadcast %cst_11 : f32 to vector<128x128xf32>
    %15 = arith.maximumf %13, %14 : vector<128x128xf32>
    %16 = arith.truncf %15 : vector<128x128xf32> to vector<128x128xbf16>
    %c0_12 = arith.constant 0 : index
    %c0_13 = arith.constant 0 : index
    %17 = vector.load %arg6[%c0_12, %c0_13] : memref<128x128xbf16, #tpu.memory_space<vmem>>, vector<128x128xbf16>
    %c0_14 = arith.constant 0 : index
    %c0_15 = arith.constant 0 : index
    %18 = vector.load %arg7[%c0_14, %c0_15] : memref<128x1xf32, #tpu.memory_space<vmem>>, vector<128x1xf32>
    %cst_16 = arith.constant dense<0.000000e+00> : vector<128x128xf32>
    %19 = tpu.matmul %17, %16, %cst_16 {dimension_numbers = #tpu.dot_dimension_numbers<[1], [0], [0], [1], [0, 0, 1, 1], [], []>} : vector<128x128xbf16>, vector<128x128xbf16>, vector<128x128xf32> -> vector<128x128xf32>
    %20 = vector.broadcast %18 : vector<128x1xf32> to vector<128x128xf32>
    %21 = arith.addf %19, %20 : vector<128x128xf32>
    %cst_17 = arith.constant 0.000000e+00 : f32
    %22 = vector.broadcast %cst_17 : f32 to vector<128x128xf32>
    %23 = arith.maximumf %21, %22 : vector<128x128xf32>
    %c0_18 = arith.constant 0 : index
    %c0_19 = arith.constant 0 : index
    %24 = vector.load %arg8[%c0_18, %c0_19] : memref<128x1xf32, #tpu.memory_space<vmem>>, vector<128x1xf32>
    %25 = vector.broadcast %24 : vector<128x1xf32> to vector<128x128xf32>
    %26 = arith.mulf %23, %25 : vector<128x128xf32>
    %cst_20 = arith.constant dense<0.000000e+00> : vector<128xf32>
    %27 = vector.multi_reduction <add>, %26, %cst_20 [0] : vector<128x128xf32> to vector<128xf32>
    %28 = vector.shape_cast %27 : vector<128xf32> to vector<1x128xf32>
    %c0_21 = arith.constant 0 : index
    %c0_22 = arith.constant 0 : index
    %29 = memref.load %arg9[%c0_21, %c0_22] : memref<1x1xf32, #tpu.memory_space<smem>>
    %30 = vector.broadcast %29 : f32 to vector<1x128xf32>
    %31 = arith.addf %28, %30 : vector<1x128xf32>
    %cst_23 = arith.constant -4.000000e+01 : f32
    %cst_24 = arith.constant 4.000000e+01 : f32
    %32 = vector.broadcast %cst_23 : f32 to vector<1x128xf32>
    %33 = arith.maximumf %32, %31 : vector<1x128xf32>
    %34 = vector.broadcast %cst_24 : f32 to vector<1x128xf32>
    %35 = arith.minimumf %34, %33 : vector<1x128xf32>
    %cst_25 = arith.constant 0.000000e+00 : f32
    %36 = vector.broadcast %cst_25 : f32 to vector<1x128xf32>
    %37 = arith.subf %36, %35 : vector<1x128xf32>
    %38 = math.exp %37 : vector<1x128xf32>
    %cst_26 = arith.constant 1.000000e+00 : f32
    %39 = vector.broadcast %cst_26 : f32 to vector<1x128xf32>
    %40 = arith.addf %39, %38 : vector<1x128xf32>
    %41 = tpu.reciprocal %40 {approx = true} : vector<1x128xf32> -> vector<1x128xf32>
    %c0_27 = arith.constant 0 : index
    %c0_28 = arith.constant 0 : index
    %42 = vector.load %arg10[%c0_27, %c0_28] : memref<1x128xf32, #tpu.memory_space<vmem>>, vector<1x128xf32>
    tpu.vector_store %arg10[%c0_27, %c0_28], %41 {strides = array<i32>} : memref<1x128xf32, #tpu.memory_space<vmem>>, vector<1x128xf32>,
    return
  }
  func.func @transform_0(%arg0: i32) -> (i32, i32) {
    %c0_i32 = arith.constant 0 : i32
    %c0_i32_0 = arith.constant 0 : i32
    return %c0_i32, %arg0 : i32, i32
  }
  func.func @transform_1(%arg0: i32) -> (i32, i32) {
    %c0_i32 = arith.constant 0 : i32
    %c0_i32_0 = arith.constant 0 : i32
    %c0_i32_1 = arith.constant 0 : i32
    return %c0_i32, %c0_i32_0 : i32, i32
  }
  func.func @transform_2(%arg0: i32) -> (i32, i32) {
    %c0_i32 = arith.constant 0 : i32
    %c0_i32_0 = arith.constant 0 : i32
    %c0_i32_1 = arith.constant 0 : i32
    return %c0_i32, %c0_i32_0 : i32, i32
  }
  func.func @transform_3(%arg0: i32) -> (i32, i32) {
    %c0_i32 = arith.constant 0 : i32
    %c0_i32_0 = arith.constant 0 : i32
    %c0_i32_1 = arith.constant 0 : i32
    return %c0_i32, %c0_i32_0 : i32, i32
  }
  func.func @transform_4(%arg0: i32) -> (i32, i32) {
    %c0_i32 = arith.constant 0 : i32
    %c0_i32_0 = arith.constant 0 : i32
    %c0_i32_1 = arith.constant 0 : i32
    return %c0_i32, %c0_i32_0 : i32, i32
  }
  func.func @transform_5(%arg0: i32) -> (i32, i32) {
    %c0_i32 = arith.constant 0 : i32
    %c0_i32_0 = arith.constant 0 : i32
    %c0_i32_1 = arith.constant 0 : i32
    return %c0_i32, %c0_i32_0 : i32, i32
  }
  func.func @transform_6(%arg0: i32) -> (i32, i32) {
    %c0_i32 = arith.constant 0 : i32
    %c0_i32_0 = arith.constant 0 : i32
    %c0_i32_1 = arith.constant 0 : i32
    return %c0_i32, %c0_i32_0 : i32, i32
  }
  func.func @transform_7(%arg0: i32) -> (i32, i32) {
    %c0_i32 = arith.constant 0 : i32
    %c0_i32_0 = arith.constant 0 : i32
    %c0_i32_1 = arith.constant 0 : i32
    return %c0_i32, %c0_i32_0 : i32, i32
  }
  func.func @transform_8(%arg0: i32) -> (i32, i32) {
    %c0_i32 = arith.constant 0 : i32
    %c0_i32_0 = arith.constant 0 : i32
    %c0_i32_1 = arith.constant 0 : i32
    return %c0_i32, %c0_i32_0 : i32, i32
  }
  func.func @transform_9(%arg0: i32) -> (i32, i32) {
    %c0_i32 = arith.constant 0 : i32
    %c0_i32_0 = arith.constant 0 : i32
    return %c0_i32, %arg0 : i32, i32
  }
}

</mosaic_0001>

<llo_original>
// kernel: tpu_custom_call.1
$region0: #{tpu_custom_call.1}
  #allocation0 [shape = 'u32[]', space=smem, size = 0x4, offset = 0x4, fixed_abs, tag = 'smem constant byte address 0x4 - core index']
  #allocation1 [shape = 'u32[144,128]{1,0:T(1,128)}', space=vmem, size = 0x12000, scoped, tag = 'internal scratch']
  #allocation2 [shape = 'f32[1,1]{1,0:T(1,128)S(6)}', space=smem, size = 0x200, scoped, tag = 'scoped memory for tpu_custom_call.1']
  %s0 = inlined_call_operand.vmem [shape: bf16[128,128], index: 0, kind: input, shape index: {}]
  %s1 = inlined_call_operand.vmem [shape: bf16[128,128], index: 1, kind: input, shape index: {}]
  %s2 = inlined_call_operand.vmem [shape: f32[128,1], index: 2, kind: input, shape index: {}]
  %s3 = inlined_call_operand.vmem [shape: bf16[128,128], index: 3, kind: input, shape index: {}]
  %s4 = inlined_call_operand.vmem [shape: f32[128,1], index: 4, kind: input, shape index: {}]
  %s5 = inlined_call_operand.vmem [shape: bf16[128,128], index: 5, kind: input, shape index: {}]
  %s6 = inlined_call_operand.vmem [shape: f32[128,1], index: 6, kind: input, shape index: {}]
  %s7 = inlined_call_operand.vmem [shape: f32[128,1], index: 7, kind: input, shape index: {}]
  %s8 = inlined_call_operand.<no memory space> [shape: f32[1,1], index: 8, kind: input, shape index: {}]
  %s9 = inlined_call_operand.hbm [shape: f32[1,128], index: 9, kind: output, shape index: {}]
  %s10 = sld [smem:[#allocation0]]
  $region46: #{tpu_custom_call.1} parent=0
    _
  %s12 = ssub.s32 1, %s10
  %s13 = scalar_select 0, %s12, %s10
  %14 = sst [smem:[#allocation2]] %s8
  $region1: #{tpu_custom_call.1} parent=0
    #allocation3 [shape = 'u8[512]{0}', space=vmem, size = 0x400, scoped, tag = 'output window, operand 0, single buffered']
    #allocation4 [shape = 's32[1]{0}', space=sflag, size = 0x4, scoped, tag = 'scoped memory for tpu_custom_call.1']
    %15 = vsyncpa [#allocation4], 0
    // Predicated region
    $region2: #{tpu_custom_call.1} parent=1 // pred_check
      _
    $region3: #{tpu_custom_call.1} parent=1 // pred_check_branch
      %17 = sbr.rel (0) target = $region5
    $region4: #{tpu_custom_call.1} parent=1 // pred_region
      _
    $region5: #{tpu_custom_call.1} parent=1 // pred_fallthru
      _
    // Predicated region
    $region6: #{tpu_custom_call.1} parent=1 // pred_check
      _
    $region7: #{tpu_custom_call.1} parent=1 // pred_check_branch
      %19 = sbr.rel (0) target = $region9
    $region8: #{tpu_custom_call.1} parent=1 // pred_region
      _
    $region9: #{tpu_custom_call.1} parent=1 // pred_fallthru
      _
    // Predicated region
    $region10: #{tpu_custom_call.1} parent=1 // pred_check
      _
    $region11: #{tpu_custom_call.1} parent=1 // pred_check_branch
      %21 = sbr.rel (0) target = $region13
    $region12: #{tpu_custom_call.1} parent=1 // pred_region
      _
    $region13: #{tpu_custom_call.1} parent=1 // pred_fallthru
      _
    // Predicated region
    $region14: #{tpu_custom_call.1} parent=1 // pred_check
      _
    $region15: #{tpu_custom_call.1} parent=1 // pred_check_branch
      %23 = sbr.rel (0) target = $region17
    $region16: #{tpu_custom_call.1} parent=1 // pred_region
      _
    $region17: #{tpu_custom_call.1} parent=1 // pred_fallthru
      _
    // Predicated region
    $region18: #{tpu_custom_call.1} parent=1 // pred_check
      _
    $region19: #{tpu_custom_call.1} parent=1 // pred_check_branch
      %25 = sbr.rel (0) target = $region21
    $region20: #{tpu_custom_call.1} parent=1 // pred_region
      _
    $region21: #{tpu_custom_call.1} parent=1 // pred_fallthru
      _
    // Predicated region
    $region22: #{tpu_custom_call.1} parent=1 // pred_check
      _
    $region23: #{tpu_custom_call.1} parent=1 // pred_check_branch
      %27 = sbr.rel (0) target = $region25
    $region24: #{tpu_custom_call.1} parent=1 // pred_region
      _
    $region25: #{tpu_custom_call.1} parent=1 // pred_fallthru
      _
    // Predicated region
    $region26: #{tpu_custom_call.1} parent=1 // pred_check
      _
    $region27: #{tpu_custom_call.1} parent=1 // pred_check_branch
      %29 = sbr.rel (0) target = $region29
    $region28: #{tpu_custom_call.1} parent=1 // pred_region
      _
    $region29: #{tpu_custom_call.1} parent=1 // pred_fallthru
      _
    // Predicated region
    $region30: #{tpu_custom_call.1} parent=1 // pred_check
      _
    $region31: #{tpu_custom_call.1} parent=1 // pred_check_branch
      %31 = sbr.rel (0) target = $region33
    $region32: #{tpu_custom_call.1} parent=1 // pred_region
      _
    $region33: #{tpu_custom_call.1} parent=1 // pred_fallthru
      _
    // Predicated region
    $region34: #{tpu_custom_call.1} parent=1 // pred_check
      _
    $region35: #{tpu_custom_call.1} parent=1 // pred_check_branch
      %33 = sbr.rel (0) target = $region37
    $region36: #{tpu_custom_call.1} parent=1 // pred_region
      _
    $region37: #{tpu_custom_call.1} parent=1 // pred_fallthru
      _
    %v35 = vld [vmem:[%s0] sm:$0xf]
    %v36 = vld [vmem:[%s0 + $0x4] sm:$0xf]
    %v37 = vld [vmem:[%s0 + $0x8] sm:$0xf]
    %v38 = vld [vmem:[%s0 + $0xc] sm:$0xf]
    %v39 = vld [vmem:[%s0 + $0x10] sm:$0xf]
    %v40 = vld [vmem:[%s0 + $0x14] sm:$0xf]
    %v41 = vld [vmem:[%s0 + $0x18] sm:$0xf]
    %v42 = vld [vmem:[%s0 + $0x1c] sm:$0xf]
    %v43 = vld [vmem:[%s0 + $0x20] sm:$0xf]
    %v44 = vld [vmem:[%s0 + $0x24] sm:$0xf]
    %v45 = vld [vmem:[%s0 + $0x28] sm:$0xf]
    %v46 = vld [vmem:[%s0 + $0x2c] sm:$0xf]
    %v47 = vld [vmem:[%s0 + $0x30] sm:$0xf]
    %v48 = vld [vmem:[%s0 + $0x34] sm:$0xf]
    %v49 = vld [vmem:[%s0 + $0x38] sm:$0xf]
    %v50 = vld [vmem:[%s0 + $0x3c] sm:$0xf]
    %v51 = vld [vmem:[%s1] sm:$0xf]
    %v52 = vld [vmem:[%s1 + $0x4] sm:$0xf]
    %v53 = vld [vmem:[%s1 + $0x8] sm:$0xf]
    %v54 = vld [vmem:[%s1 + $0xc] sm:$0xf]
    %v55 = vld [vmem:[%s1 + $0x10] sm:$0xf]
    %v56 = vld [vmem:[%s1 + $0x14] sm:$0xf]
    %v57 = vld [vmem:[%s1 + $0x18] sm:$0xf]
    %v58 = vld [vmem:[%s1 + $0x1c] sm:$0xf]
    %v59 = vld [vmem:[%s1 + $0x20] sm:$0xf]
    %v60 = vld [vmem:[%s1 + $0x24] sm:$0xf]
    %v61 = vld [vmem:[%s1 + $0x28] sm:$0xf]
    %v62 = vld [vmem:[%s1 + $0x2c] sm:$0xf]
    %v63 = vld [vmem:[%s1 + $0x30] sm:$0xf]
    %v64 = vld [vmem:[%s1 + $0x34] sm:$0xf]
    %v65 = vld [vmem:[%s1 + $0x38] sm:$0xf]
    %v66 = vld [vmem:[%s1 + $0x3c] sm:$0xf]
    %v67 = vld [vmem:[%s2] sm:$0xff]
    %v68 = vld [vmem:[%s2 + $0x8] sm:$0xff]
    %v69 = vld [vmem:[%s2 + $0x10] sm:$0xff]
    %v70 = vld [vmem:[%s2 + $0x18] sm:$0xff]
    %v71 = vld [vmem:[%s2 + $0x20] sm:$0xff]
    %v72 = vld [vmem:[%s2 + $0x28] sm:$0xff]
    %v73 = vld [vmem:[%s2 + $0x30] sm:$0xff]
    %v74 = vld [vmem:[%s2 + $0x38] sm:$0xff]
    %v75 = vld [vmem:[%s2 + $0x40] sm:$0xff]
    %v76 = vld [vmem:[%s2 + $0x48] sm:$0xff]
    %v77 = vld [vmem:[%s2 + $0x50] sm:$0xff]
    %v78 = vld [vmem:[%s2 + $0x58] sm:$0xff]
    %v79 = vld [vmem:[%s2 + $0x60] sm:$0xff]
    %v80 = vld [vmem:[%s2 + $0x68] sm:$0xff]
    %v81 = vld [vmem:[%s2 + $0x70] sm:$0xff]
    %v82 = vld [vmem:[%s2 + $0x78] sm:$0xff]
    %84 = vset.pattern.permute.xlu0 0
    %85 = vperm.xlu0 %84, %v67
    %v86 = vpop.permute.xlu0 %85
    %89 = vset.pattern.permute.xlu0 0
    %90 = vperm.xlu0 %89, %v68
    %v91 = vpop.permute.xlu0 %90
    %94 = vset.pattern.permute.xlu0 0
    %95 = vperm.xlu0 %94, %v69
    %v96 = vpop.permute.xlu0 %95
    %99 = vset.pattern.permute.xlu0 0
    %100 = vperm.xlu0 %99, %v70
    %v101 = vpop.permute.xlu0 %100
    %104 = vset.pattern.permute.xlu0 0
    %105 = vperm.xlu0 %104, %v71
    %v106 = vpop.permute.xlu0 %105
    %109 = vset.pattern.permute.xlu0 0
    %110 = vperm.xlu0 %109, %v72
    %v111 = vpop.permute.xlu0 %110
    %114 = vset.pattern.permute.xlu0 0
    %115 = vperm.xlu0 %114, %v73
    %v116 = vpop.permute.xlu0 %115
    %119 = vset.pattern.permute.xlu0 0
    %120 = vperm.xlu0 %119, %v74
    %v121 = vpop.permute.xlu0 %120
    %124 = vset.pattern.permute.xlu0 0
    %125 = vperm.xlu0 %124, %v75
    %v126 = vpop.permute.xlu0 %125
    %129 = vset.pattern.permute.xlu0 0
    %130 = vperm.xlu0 %129, %v76
    %v131 = vpop.permute.xlu0 %130
    %134 = vset.pattern.permute.xlu0 0
    %135 = vperm.xlu0 %134, %v77
    %v136 = vpop.permute.xlu0 %135
    %139 = vset.pattern.permute.xlu0 0
    %140 = vperm.xlu0 %139, %v78
    %v141 = vpop.permute.xlu0 %140
    %144 = vset.pattern.permute.xlu0 0
    %145 = vperm.xlu0 %144, %v79
    %v146 = vpop.permute.xlu0 %145
    %149 = vset.pattern.permute.xlu0 0
    %150 = vperm.xlu0 %149, %v80
    %v151 = vpop.permute.xlu0 %150
    %154 = vset.pattern.permute.xlu0 0
    %155 = vperm.xlu0 %154, %v81
    %v156 = vpop.permute.xlu0 %155
    %159 = vset.pattern.permute.xlu0 0
    %160 = vperm.xlu0 %159, %v82
    %v161 = vpop.permute.xlu0 %160
    %v179 = vunpack.c.l.b16 %v51
    %v180 = vunpack.c.l.b16 %v52
    %v181 = vunpack.c.l.b16 %v53
    %v182 = vunpack.c.l.b16 %v54
    %v183 = vunpack.c.l.b16 %v55
    %v184 = vunpack.c.l.b16 %v56
    %v185 = vunpack.c.l.b16 %v57
    %v186 = vunpack.c.l.b16 %v58
    %v187 = vunpack.c.l.b16 %v59
    %v188 = vunpack.c.l.b16 %v60
    %v189 = vunpack.c.l.b16 %v61
    %v190 = vunpack.c.l.b16 %v62
    %v191 = vunpack.c.l.b16 %v63
    %v192 = vunpack.c.l.b16 %v64
    %v193 = vunpack.c.l.b16 %v65
    %v194 = vunpack.c.l.b16 %v66
    %v195 = vpack.c.b16 %v180, %v179
    %v196 = vpack.c.b16 %v182, %v181
    %v197 = vpack.c.b16 %v184, %v183
    %v198 = vpack.c.b16 %v186, %v185
    %v199 = vpack.c.b16 %v188, %v187
    %v200 = vpack.c.b16 %v190, %v189
    %v201 = vpack.c.b16 %v192, %v191
    %v202 = vpack.c.b16 %v194, %v193
    %v227 = vunpack.c.l.b16 %v35
    %v228 = vunpack.c.l.b16 %v36
    %v229 = vunpack.c.l.b16 %v37
    %v230 = vunpack.c.l.b16 %v38
    %v231 = vunpack.c.l.b16 %v39
    %v232 = vunpack.c.l.b16 %v40
    %v233 = vunpack.c.l.b16 %v41
    %v234 = vunpack.c.l.b16 %v42
    %v235 = vunpack.c.l.b16 %v43
    %v236 = vunpack.c.l.b16 %v44
    %v237 = vunpack.c.l.b16 %v45
    %v238 = vunpack.c.l.b16 %v46
    %v239 = vunpack.c.l.b16 %v47
    %v240 = vunpack.c.l.b16 %v48
    %v241 = vunpack.c.l.b16 %v49
    %v242 = vunpack.c.l.b16 %v50
    %v243 = vpack.c.b16 %v228, %v227
    %v244 = vpack.c.b16 %v230, %v229
    %v245 = vpack.c.b16 %v232, %v231
    %v246 = vpack.c.b16 %v234, %v233
    %v247 = vpack.c.b16 %v236, %v235
    %v248 = vpack.c.b16 %v238, %v237
    %v249 = vpack.c.b16 %v240, %v239
    %v250 = vpack.c.b16 %v242, %v241
    %259 = vmatprep.subr.bf16.mxu0 0
    %260 = vmatpush1.bf16.msra.mxu0 %v243
    %261 = vmatprep.subr.bf16.mxu0 0
    %262 = vmatpush1.bf16.msra.mxu0 %v244
    %263 = vmatprep.subr.bf16.mxu0 0
    %264 = vmatpush1.bf16.msra.mxu0 %v245
    %265 = vmatprep.subr.bf16.mxu0 0
    %266 = vmatpush1.bf16.msra.mxu0 %v246
    %267 = vmatprep.subr.bf16.mxu0 0
    %268 = vmatpush1.bf16.msra.mxu0 %v247
    %269 = vmatprep.subr.bf16.mxu0 0
    %270 = vmatpush1.bf16.msra.mxu0 %v248
    %271 = vmatprep.subr.bf16.mxu0 0
    %272 = vmatpush1.bf16.msra.mxu0 %v249
    %273 = vmatprep.subr.bf16.mxu0 0
    %274 = vmatpush1.bf16.msra.mxu0 %v250
    %275 = vmatprep.subr.bf16.mxu0 0
    %276 = vmatpush1.bf16.msra.mxu0 0
    %277 = vmatprep.subr.bf16.mxu0 0
    %278 = vmatpush1.bf16.msra.mxu0 0
    %279 = vmatprep.subr.bf16.mxu0 0
    %280 = vmatpush1.bf16.msra.mxu0 0
    %281 = vmatprep.subr.bf16.mxu0 0
    %282 = vmatpush1.bf16.msra.mxu0 0
    %283 = vmatprep.subr.bf16.mxu0 0
    %284 = vmatpush1.bf16.msra.mxu0 0
    %285 = vmatprep.subr.bf16.mxu0 0
    %286 = vmatpush1.bf16.msra.mxu0 0
    %287 = vmatprep.subr.bf16.mxu0 0
    %288 = vmatpush1.bf16.msra.mxu0 0
    %289 = vmatprep.subr.bf16.mxu0 0
    %290 = vmatpush1.bf16.msra.mxu0 0
    %291 = vmatprep.mubr.bf16.mxu0 0
    %292 = vmatmul.mubr.bf16.gmra.mrb[0].mxu0 %v195
    %v293 = vpop.f32.mrb[0].mxu0
    %v294 = vadd.f32 %v86, %v293
    %v295 = vpop.f32.mrb[0].mxu0
    %v296 = vpop.f32.mrb[0].mxu0
    %v297 = vadd.f32 %v91, %v296
    %v298 = vpop.f32.mrb[0].mxu0
    %299 = vmatprep.mubr.bf16.mxu0 0
    %300 = vmatmul.mubr.bf16.gmra.mrb[0].mxu0 %v196
    %v301 = vpop.f32.mrb[0].mxu0
    %v302 = vadd.f32 %v96, %v301
    %v303 = vpop.f32.mrb[0].mxu0
    %v304 = vpop.f32.mrb[0].mxu0
    %v305 = vadd.f32 %v101, %v304
    %v306 = vpop.f32.mrb[0].mxu0
    %307 = vmatprep.mubr.bf16.mxu0 0
    %308 = vmatmul.mubr.bf16.gmra.mrb[0].mxu0 %v197
    %v309 = vpop.f32.mrb[0].mxu0
    %v310 = vadd.f32 %v106, %v309
    %v311 = vpop.f32.mrb[0].mxu0
    %v312 = vpop.f32.mrb[0].mxu0
    %v313 = vadd.f32 %v111, %v312
    %v314 = vpop.f32.mrb[0].mxu0
    %315 = vmatprep.mubr.bf16.mxu0 0
    %316 = vmatmul.mubr.bf16.gmra.mrb[0].mxu0 %v198
    %v317 = vpop.f32.mrb[0].mxu0
    %v318 = vadd.f32 %v116, %v317
    %v319 = vpop.f32.mrb[0].mxu0
    %v320 = vpop.f32.mrb[0].mxu0
    %v321 = vadd.f32 %v121, %v320
    %v322 = vpop.f32.mrb[0].mxu0
    %323 = vmatprep.mubr.bf16.mxu0 0
    %324 = vmatmul.mubr.bf16.gmra.mrb[0].mxu0 %v199
    %v325 = vpop.f32.mrb[0].mxu0
    %v326 = vadd.f32 %v126, %v325
    %v327 = vpop.f32.mrb[0].mxu0
    %v328 = vpop.f32.mrb[0].mxu0
    %v329 = vadd.f32 %v131, %v328
    %v330 = vpop.f32.mrb[0].mxu0
    %331 = vmatprep.mubr.bf16.mxu0 0
    %332 = vmatmul.mubr.bf16.gmra.mrb[0].mxu0 %v200
    %v333 = vpop.f32.mrb[0].mxu0
    %v334 = vadd.f32 %v136, %v333
    %v335 = vpop.f32.mrb[0].mxu0
    %v336 = vpop.f32.mrb[0].mxu0
    %v337 = vadd.f32 %v141, %v336
    %v338 = vpop.f32.mrb[0].mxu0
    %339 = vmatprep.mubr.bf16.mxu0 0
    %340 = vmatmul.mubr.bf16.gmra.mrb[0].mxu0 %v201
    %v341 = vpop.f32.mrb[0].mxu0
    %v342 = vadd.f32 %v146, %v341
    %v343 = vpop.f32.mrb[0].mxu0
    %v344 = vpop.f32.mrb[0].mxu0
    %v345 = vadd.f32 %v151, %v344
    %v346 = vpop.f32.mrb[0].mxu0
    %347 = vmatprep.mubr.bf16.mxu0 0
    %348 = vmatmul.mubr.bf16.gmra.mrb[0].mxu0 %v202
    %v349 = vpop.f32.mrb[0].mxu0
    %v350 = vadd.f32 %v156, %v349
    %v351 = vpop.f32.mrb[0].mxu0
    %v352 = vpop.f32.mrb[0].mxu0
    %v353 = vadd.f32 %v161, %v352
    %v354 = vpop.f32.mrb[0].mxu0
    %355 = vdwg.mxu0
    %v356 = vmax.f32 %v294, 0.0
    %v357 = vmax.f32 %v297, 0.0
    %v358 = vmax.f32 %v302, 0.0
    %v359 = vmax.f32 %v305, 0.0
    %v360 = vmax.f32 %v310, 0.0
    %v361 = vmax.f32 %v313, 0.0
    %v362 = vmax.f32 %v318, 0.0
    %v363 = vmax.f32 %v321, 0.0
    %v364 = vmax.f32 %v326, 0.0
    %v365 = vmax.f32 %v329, 0.0
    %v366 = vmax.f32 %v334, 0.0
    %v367 = vmax.f32 %v337, 0.0
    %v368 = vmax.f32 %v342, 0.0
    %v369 = vmax.f32 %v345, 0.0
    %v370 = vmax.f32 %v350, 0.0
    %v371 = vmax.f32 %v353, 0.0
    %v372 = vpack.c.bf16 %v357, %v356
    %v373 = vpack.c.bf16 %v359, %v358
    %v374 = vpack.c.bf16 %v361, %v360
    %v375 = vpack.c.bf16 %v363, %v362
    %v376 = vpack.c.bf16 %v365, %v364
    %v377 = vpack.c.bf16 %v367, %v366
    %v378 = vpack.c.bf16 %v369, %v368
    %v379 = vpack.c.bf16 %v371, %v370
    %v380 = vld [vmem:[%s3] sm:$0xf]
    %v381 = vld [vmem:[%s3 + $0x4] sm:$0xf]
    %v382 = vld [vmem:[%s3 + $0x8] sm:$0xf]
    %v383 = vld [vmem:[%s3 + $0xc] sm:$0xf]
    %v384 = vld [vmem:[%s3 + $0x10] sm:$0xf]
    %v385 = vld [vmem:[%s3 + $0x14] sm:$0xf]
    %v386 = vld [vmem:[%s3 + $0x18] sm:$0xf]
    %v387 = vld [vmem:[%s3 + $0x1c] sm:$0xf]
    %v388 = vld [vmem:[%s3 + $0x20] sm:$0xf]
    %v389 = vld [vmem:[%s3 + $0x24] sm:$0xf]
    %v390 = vld [vmem:[%s3 + $0x28] sm:$0xf]
    %v391 = vld [vmem:[%s3 + $0x2c] sm:$0xf]
    %v392 = vld [vmem:[%s3 + $0x30] sm:$0xf]
    %v393 = vld [vmem:[%s3 + $0x34] sm:$0xf]
    %v394 = vld [vmem:[%s3 + $0x38] sm:$0xf]
    %v395 = vld [vmem:[%s3 + $0x3c] sm:$0xf]
    %v396 = vld [vmem:[%s4] sm:$0xff]
    %v397 = vld [vmem:[%s4 + $0x8] sm:$0xff]
    %v398 = vld [vmem:[%s4 + $0x10] sm:$0xff]
    %v399 = vld [vmem:[%s4 + $0x18] sm:$0xff]
    %v400 = vld [vmem:[%s4 + $0x20] sm:$0xff]
    %v401 = vld [vmem:[%s4 + $0x28] sm:$0xff]
    %v402 = vld [vmem:[%s4 + $0x30] sm:$0xff]
    %v403 = vld [vmem:[%s4 + $0x38] sm:$0xff]
    %v404 = vld [vmem:[%s4 + $0x40] sm:$0xff]
    %v405 = vld [vmem:[%s4 + $0x48] sm:$0xff]
    %v406 = vld [vmem:[%s4 + $0x50] sm:$0xff]
    %v407 = vld [vmem:[%s4 + $0x58] sm:$0xff]
    %v408 = vld [vmem:[%s4 + $0x60] sm:$0xff]
    %v409 = vld [vmem:[%s4 + $0x68] sm:$0xff]
    %v410 = vld [vmem:[%s4 + $0x70] sm:$0xff]
    %v411 = vld [vmem:[%s4 + $0x78] sm:$0xff]
    %413 = vset.pattern.permute.xlu0 0
    %414 = vperm.xlu0 %413, %v396
    %v415 = vpop.permute.xlu0 %414
    %418 = vset.pattern.permute.xlu0 0
    %419 = vperm.xlu0 %418, %v397
    %v420 = vpop.permute.xlu0 %419
    %423 = vset.pattern.permute.xlu0 0
    %424 = vperm.xlu0 %423, %v398
    %v425 = vpop.permute.xlu0 %424
    %428 = vset.pattern.permute.xlu0 0
    %429 = vperm.xlu0 %428, %v399
    %v430 = vpop.permute.xlu0 %429
    %433 = vset.pattern.permute.xlu0 0
    %434 = vperm.xlu0 %433, %v400
    %v435 = vpop.permute.xlu0 %434
    %438 = vset.pattern.permute.xlu0 0
    %439 = vperm.xlu0 %438, %v401
    %v440 = vpop.permute.xlu0 %439
    %443 = vset.pattern.permute.xlu0 0
    %444 = vperm.xlu0 %443, %v402
    %v445 = vpop.permute.xlu0 %444
    %448 = vset.pattern.permute.xlu0 0
    %449 = vperm.xlu0 %448, %v403
    %v450 = vpop.permute.xlu0 %449
    %453 = vset.pattern.permute.xlu0 0
    %454 = vperm.xlu0 %453, %v404
    %v455 = vpop.permute.xlu0 %454
    %458 = vset.pattern.permute.xlu0 0
    %459 = vperm.xlu0 %458, %v405
    %v460 = vpop.permute.xlu0 %459
    %463 = vset.pattern.permute.xlu0 0
    %464 = vperm.xlu0 %463, %v406
    %v465 = vpop.permute.xlu0 %464
    %468 = vset.pattern.permute.xlu0 0
    %469 = vperm.xlu0 %468, %v407
    %v470 = vpop.permute.xlu0 %469
    %473 = vset.pattern.permute.xlu0 0
    %474 = vperm.xlu0 %473, %v408
    %v475 = vpop.permute.xlu0 %474
    %478 = vset.pattern.permute.xlu0 0
    %479 = vperm.xlu0 %478, %v409
    %v480 = vpop.permute.xlu0 %479
    %483 = vset.pattern.permute.xlu0 0
    %484 = vperm.xlu0 %483, %v410
    %v485 = vpop.permute.xlu0 %484
    %488 = vset.pattern.permute.xlu0 0
    %489 = vperm.xlu0 %488, %v411
    %v490 = vpop.permute.xlu0 %489
    %v508 = vunpack.c.l.b16 %v380
    %v509 = vunpack.c.l.b16 %v381
    %v510 = vunpack.c.l.b16 %v382
    %v511 = vunpack.c.l.b16 %v383
    %v512 = vunpack.c.l.b16 %v384
    %v513 = vunpack.c.l.b16 %v385
    %v514 = vunpack.c.l.b16 %v386
    %v515 = vunpack.c.l.b16 %v387
    %v516 = vunpack.c.l.b16 %v388
    %v517 = vunpack.c.l.b16 %v389
    %v518 = vunpack.c.l.b16 %v390
    %v519 = vunpack.c.l.b16 %v391
    %v520 = vunpack.c.l.b16 %v392
    %v521 = vunpack.c.l.b16 %v393
    %v522 = vunpack.c.l.b16 %v394
    %v523 = vunpack.c.l.b16 %v395
    %v524 = vpack.c.b16 %v509, %v508
    %v525 = vpack.c.b16 %v511, %v510
    %v526 = vpack.c.b16 %v513, %v512
    %v527 = vpack.c.b16 %v515, %v514
    %v528 = vpack.c.b16 %v517, %v516
    %v529 = vpack.c.b16 %v519, %v518
    %v530 = vpack.c.b16 %v521, %v520
    %v531 = vpack.c.b16 %v523, %v522
    %540 = vmatprep.subr.bf16.mxu0 0
    %541 = vmatpush1.bf16.msra.mxu0 %v372
    %542 = vmatprep.subr.bf16.mxu0 0
    %543 = vmatpush1.bf16.msra.mxu0 %v373
    %544 = vmatprep.subr.bf16.mxu0 0
    %545 = vmatpush1.bf16.msra.mxu0 %v374
    %546 = vmatprep.subr.bf16.mxu0 0
    %547 = vmatpush1.bf16.msra.mxu0 %v375
    %548 = vmatprep.subr.bf16.mxu0 0
    %549 = vmatpush1.bf16.msra.mxu0 %v376
    %550 = vmatprep.subr.bf16.mxu0 0
    %551 = vmatpush1.bf16.msra.mxu0 %v377
    %552 = vmatprep.subr.bf16.mxu0 0
    %553 = vmatpush1.bf16.msra.mxu0 %v378
    %554 = vmatprep.subr.bf16.mxu0 0
    %555 = vmatpush1.bf16.msra.mxu0 %v379
    %556 = vmatprep.subr.bf16.mxu0 0
    %557 = vmatpush1.bf16.msra.mxu0 0
    %558 = vmatprep.subr.bf16.mxu0 0
    %559 = vmatpush1.bf16.msra.mxu0 0
    %560 = vmatprep.subr.bf16.mxu0 0
    %561 = vmatpush1.bf16.msra.mxu0 0
    %562 = vmatprep.subr.bf16.mxu0 0
    %563 = vmatpush1.bf16.msra.mxu0 0
    %564 = vmatprep.subr.bf16.mxu0 0
    %565 = vmatpush1.bf16.msra.mxu0 0
    %566 = vmatprep.subr.bf16.mxu0 0
    %567 = vmatpush1.bf16.msra.mxu0 0
    %568 = vmatprep.subr.bf16.mxu0 0
    %569 = vmatpush1.bf16.msra.mxu0 0
    %570 = vmatprep.subr.bf16.mxu0 0
    %571 = vmatpush1.bf16.msra.mxu0 0
    %572 = vmatprep.mubr.bf16.mxu0 0
    %573 = vmatmul.mubr.bf16.gmra.mrb[0].mxu0 %v524
    %v574 = vpop.f32.mrb[0].mxu0
    %v575 = vadd.f32 %v415, %v574
    %v576 = vpop.f32.mrb[0].mxu0
    %v577 = vpop.f32.mrb[0].mxu0
    %v578 = vadd.f32 %v420, %v577
    %v579 = vpop.f32.mrb[0].mxu0
    %580 = vmatprep.mubr.bf16.mxu0 0
    %581 = vmatmul.mubr.bf16.gmra.mrb[0].mxu0 %v525
    %v582 = vpop.f32.mrb[0].mxu0
    %v583 = vadd.f32 %v425, %v582
    %v584 = vpop.f32.mrb[0].mxu0
    %v585 = vpop.f32.mrb[0].mxu0
    %v586 = vadd.f32 %v430, %v585
    %v587 = vpop.f32.mrb[0].mxu0
    %588 = vmatprep.mubr.bf16.mxu0 0
    %589 = vmatmul.mubr.bf16.gmra.mrb[0].mxu0 %v526
    %v590 = vpop.f32.mrb[0].mxu0
    %v591 = vadd.f32 %v435, %v590
    %v592 = vpop.f32.mrb[0].mxu0
    %v593 = vpop.f32.mrb[0].mxu0
    %v594 = vadd.f32 %v440, %v593
    %v595 = vpop.f32.mrb[0].mxu0
    %596 = vmatprep.mubr.bf16.mxu0 0
    %597 = vmatmul.mubr.bf16.gmra.mrb[0].mxu0 %v527
    %v598 = vpop.f32.mrb[0].mxu0
    %v599 = vadd.f32 %v445, %v598
    %v600 = vpop.f32.mrb[0].mxu0
    %v601 = vpop.f32.mrb[0].mxu0
    %v602 = vadd.f32 %v450, %v601
    %v603 = vpop.f32.mrb[0].mxu0
    %604 = vmatprep.mubr.bf16.mxu0 0
    %605 = vmatmul.mubr.bf16.gmra.mrb[0].mxu0 %v528
    %v606 = vpop.f32.mrb[0].mxu0
    %v607 = vadd.f32 %v455, %v606
    %v608 = vpop.f32.mrb[0].mxu0
    %v609 = vpop.f32.mrb[0].mxu0
    %v610 = vadd.f32 %v460, %v609
    %v611 = vpop.f32.mrb[0].mxu0
    %612 = vmatprep.mubr.bf16.mxu0 0
    %613 = vmatmul.mubr.bf16.gmra.mrb[0].mxu0 %v529
    %v614 = vpop.f32.mrb[0].mxu0
    %v615 = vadd.f32 %v465, %v614
    %v616 = vpop.f32.mrb[0].mxu0
    %v617 = vpop.f32.mrb[0].mxu0
    %v618 = vadd.f32 %v470, %v617
    %v619 = vpop.f32.mrb[0].mxu0
    %620 = vmatprep.mubr.bf16.mxu0 0
    %621 = vmatmul.mubr.bf16.gmra.mrb[0].mxu0 %v530
    %v622 = vpop.f32.mrb[0].mxu0
    %v623 = vadd.f32 %v475, %v622
    %v624 = vpop.f32.mrb[0].mxu0
    %v625 = vpop.f32.mrb[0].mxu0
    %v626 = vadd.f32 %v480, %v625
    %v627 = vpop.f32.mrb[0].mxu0
    %628 = vmatprep.mubr.bf16.mxu0 0
    %629 = vmatmul.mubr.bf16.gmra.mrb[0].mxu0 %v531
    %v630 = vpop.f32.mrb[0].mxu0
    %v631 = vadd.f32 %v485, %v630
    %v632 = vpop.f32.mrb[0].mxu0
    %v633 = vpop.f32.mrb[0].mxu0
    %v634 = vadd.f32 %v490, %v633
    %v635 = vpop.f32.mrb[0].mxu0
    %636 = vdwg.mxu0
    %v637 = vmax.f32 %v575, 0.0
    %v638 = vmax.f32 %v578, 0.0
    %v639 = vmax.f32 %v583, 0.0
    %v640 = vmax.f32 %v586, 0.0
    %v641 = vmax.f32 %v591, 0.0
    %v642 = vmax.f32 %v594, 0.0
    %v643 = vmax.f32 %v599, 0.0
    %v644 = vmax.f32 %v602, 0.0
    %v645 = vmax.f32 %v607, 0.0
    %v646 = vmax.f32 %v610, 0.0
    %v647 = vmax.f32 %v615, 0.0
    %v648 = vmax.f32 %v618, 0.0
    %v649 = vmax.f32 %v623, 0.0
    %v650 = vmax.f32 %v626, 0.0
    %v651 = vmax.f32 %v631, 0.0
    %v652 = vmax.f32 %v634, 0.0
    %v653 = vpack.c.bf16 %v638, %v637
    %v654 = vpack.c.bf16 %v640, %v639
    %v655 = vpack.c.bf16 %v642, %v641
    %v656 = vpack.c.bf16 %v644, %v643
    %v657 = vpack.c.bf16 %v646, %v645
    %v658 = vpack.c.bf16 %v648, %v647
    %v659 = vpack.c.bf16 %v650, %v649
    %v660 = vpack.c.bf16 %v652, %v651
    %v661 = vld [vmem:[%s5] sm:$0xf]
    %v662 = vld [vmem:[%s5 + $0x4] sm:$0xf]
    %v663 = vld [vmem:[%s5 + $0x8] sm:$0xf]
    %v664 = vld [vmem:[%s5 + $0xc] sm:$0xf]
    %v665 = vld [vmem:[%s5 + $0x10] sm:$0xf]
    %v666 = vld [vmem:[%s5 + $0x14] sm:$0xf]
    %v667 = vld [vmem:[%s5 + $0x18] sm:$0xf]
    %v668 = vld [vmem:[%s5 + $0x1c] sm:$0xf]
    %v669 = vld [vmem:[%s5 + $0x20] sm:$0xf]
    %v670 = vld [vmem:[%s5 + $0x24] sm:$0xf]
    %v671 = vld [vmem:[%s5 + $0x28] sm:$0xf]
    %v672 = vld [vmem:[%s5 + $0x2c] sm:$0xf]
    %v673 = vld [vmem:[%s5 + $0x30] sm:$0xf]
    %v674 = vld [vmem:[%s5 + $0x34] sm:$0xf]
    %v675 = vld [vmem:[%s5 + $0x38] sm:$0xf]
    %v676 = vld [vmem:[%s5 + $0x3c] sm:$0xf]
    %v677 = vld [vmem:[%s6] sm:$0xff]
    %v678 = vld [vmem:[%s6 + $0x8] sm:$0xff]
    %v679 = vld [vmem:[%s6 + $0x10] sm:$0xff]
    %v680 = vld [vmem:[%s6 + $0x18] sm:$0xff]
    %v681 = vld [vmem:[%s6 + $0x20] sm:$0xff]
    %v682 = vld [vmem:[%s6 + $0x28] sm:$0xff]
    %v683 = vld [vmem:[%s6 + $0x30] sm:$0xff]
    %v684 = vld [vmem:[%s6 + $0x38] sm:$0xff]
    %v685 = vld [vmem:[%s6 + $0x40] sm:$0xff]
    %v686 = vld [vmem:[%s6 + $0x48] sm:$0xff]
    %v687 = vld [vmem:[%s6 + $0x50] sm:$0xff]
    %v688 = vld [vmem:[%s6 + $0x58] sm:$0xff]
    %v689 = vld [vmem:[%s6 + $0x60] sm:$0xff]
    %v690 = vld [vmem:[%s6 + $0x68] sm:$0xff]
    %v691 = vld [vmem:[%s6 + $0x70] sm:$0xff]
    %v692 = vld [vmem:[%s6 + $0x78] sm:$0xff]
    %694 = vset.pattern.permute.xlu0 0
    %695 = vperm.xlu0 %694, %v677
    %v696 = vpop.permute.xlu0 %695
    %699 = vset.pattern.permute.xlu0 0
    %700 = vperm.xlu0 %699, %v678
    %v701 = vpop.permute.xlu0 %700
    %704 = vset.pattern.permute.xlu0 0
    %705 = vperm.xlu0 %704, %v679
    %v706 = vpop.permute.xlu0 %705
    %709 = vset.pattern.permute.xlu0 0
    %710 = vperm.xlu0 %709, %v680
    %v711 = vpop.permute.xlu0 %710
    %714 = vset.pattern.permute.xlu0 0
    %715 = vperm.xlu0 %714, %v681
    %v716 = vpop.permute.xlu0 %715
    %719 = vset.pattern.permute.xlu0 0
    %720 = vperm.xlu0 %719, %v682
    %v721 = vpop.permute.xlu0 %720
    %724 = vset.pattern.permute.xlu0 0
    %725 = vperm.xlu0 %724, %v683
    %v726 = vpop.permute.xlu0 %725
    %729 = vset.pattern.permute.xlu0 0
    %730 = vperm.xlu0 %729, %v684
    %v731 = vpop.permute.xlu0 %730
    %734 = vset.pattern.permute.xlu0 0
    %735 = vperm.xlu0 %734, %v685
    %v736 = vpop.permute.xlu0 %735
    %739 = vset.pattern.permute.xlu0 0
    %740 = vperm.xlu0 %739, %v686
    %v741 = vpop.permute.xlu0 %740
    %744 = vset.pattern.permute.xlu0 0
    %745 = vperm.xlu0 %744, %v687
    %v746 = vpop.permute.xlu0 %745
    %749 = vset.pattern.permute.xlu0 0
    %750 = vperm.xlu0 %749, %v688
    %v751 = vpop.permute.xlu0 %750
    %754 = vset.pattern.permute.xlu0 0
    %755 = vperm.xlu0 %754, %v689
    %v756 = vpop.permute.xlu0 %755
    %759 = vset.pattern.permute.xlu0 0
    %760 = vperm.xlu0 %759, %v690
    %v761 = vpop.permute.xlu0 %760
    %764 = vset.pattern.permute.xlu0 0
    %765 = vperm.xlu0 %764, %v691
    %v766 = vpop.permute.xlu0 %765
    %769 = vset.pattern.permute.xlu0 0
    %770 = vperm.xlu0 %769, %v692
    %v771 = vpop.permute.xlu0 %770
    %v789 = vunpack.c.l.b16 %v661
    %v790 = vunpack.c.l.b16 %v662
    %v791 = vunpack.c.l.b16 %v663
    %v792 = vunpack.c.l.b16 %v664
    %v793 = vunpack.c.l.b16 %v665
    %v794 = vunpack.c.l.b16 %v666
    %v795 = vunpack.c.l.b16 %v667
    %v796 = vunpack.c.l.b16 %v668
    %v797 = vunpack.c.l.b16 %v669
    %v798 = vunpack.c.l.b16 %v670
    %v799 = vunpack.c.l.b16 %v671
    %v800 = vunpack.c.l.b16 %v672
    %v801 = vunpack.c.l.b16 %v673
    %v802 = vunpack.c.l.b16 %v674
    %v803 = vunpack.c.l.b16 %v675
    %v804 = vunpack.c.l.b16 %v676
    %v805 = vpack.c.b16 %v790, %v789
    %v806 = vpack.c.b16 %v792, %v791
    %v807 = vpack.c.b16 %v794, %v793
    %v808 = vpack.c.b16 %v796, %v795
    %v809 = vpack.c.b16 %v798, %v797
    %v810 = vpack.c.b16 %v800, %v799
    %v811 = vpack.c.b16 %v802, %v801
    %v812 = vpack.c.b16 %v804, %v803
    %821 = vmatprep.subr.bf16.mxu0 0
    %822 = vmatpush1.bf16.msra.mxu0 %v653
    %823 = vmatprep.subr.bf16.mxu0 0
    %824 = vmatpush1.bf16.msra.mxu0 %v654
    %825 = vmatprep.subr.bf16.mxu0 0
    %826 = vmatpush1.bf16.msra.mxu0 %v655
    %827 = vmatprep.subr.bf16.mxu0 0
    %828 = vmatpush1.bf16.msra.mxu0 %v656
    %829 = vmatprep.subr.bf16.mxu0 0
    %830 = vmatpush1.bf16.msra.mxu0 %v657
    %831 = vmatprep.subr.bf16.mxu0 0
    %832 = vmatpush1.bf16.msra.mxu0 %v658
    %833 = vmatprep.subr.bf16.mxu0 0
    %834 = vmatpush1.bf16.msra.mxu0 %v659
    %835 = vmatprep.subr.bf16.mxu0 0
    %836 = vmatpush1.bf16.msra.mxu0 %v660
    %837 = vmatprep.subr.bf16.mxu0 0
    %838 = vmatpush1.bf16.msra.mxu0 0
    %839 = vmatprep.subr.bf16.mxu0 0
    %840 = vmatpush1.bf16.msra.mxu0 0
    %841 = vmatprep.subr.bf16.mxu0 0
    %842 = vmatpush1.bf16.msra.mxu0 0
    %843 = vmatprep.subr.bf16.mxu0 0
    %844 = vmatpush1.bf16.msra.mxu0 0
    %845 = vmatprep.subr.bf16.mxu0 0
    %846 = vmatpush1.bf16.msra.mxu0 0
    %847 = vmatprep.subr.bf16.mxu0 0
    %848 = vmatpush1.bf16.msra.mxu0 0
    %849 = vmatprep.subr.bf16.mxu0 0
    %850 = vmatpush1.bf16.msra.mxu0 0
    %851 = vmatprep.subr.bf16.mxu0 0
    %852 = vmatpush1.bf16.msra.mxu0 0
    %853 = vmatprep.mubr.bf16.mxu0 0
    %854 = vmatmul.mubr.bf16.gmra.mrb[0].mxu0 %v805
    %v855 = vpop.f32.mrb[0].mxu0
    %v856 = vadd.f32 %v696, %v855
    %v857 = vpop.f32.mrb[0].mxu0
    %v858 = vpop.f32.mrb[0].mxu0
    %v859 = vadd.f32 %v701, %v858
    %v860 = vpop.f32.mrb[0].mxu0
    %861 = vmatprep.mubr.bf16.mxu0 0
    %862 = vmatmul.mubr.bf16.gmra.mrb[0].mxu0 %v806
    %v863 = vpop.f32.mrb[0].mxu0
    %v864 = vadd.f32 %v706, %v863
    %v865 = vpop.f32.mrb[0].mxu0
    %v866 = vpop.f32.mrb[0].mxu0
    %v867 = vadd.f32 %v711, %v866
    %v868 = vpop.f32.mrb[0].mxu0
    %869 = vmatprep.mubr.bf16.mxu0 0
    %870 = vmatmul.mubr.bf16.gmra.mrb[0].mxu0 %v807
    %v871 = vpop.f32.mrb[0].mxu0
    %v872 = vadd.f32 %v716, %v871
    %v873 = vpop.f32.mrb[0].mxu0
    %v874 = vpop.f32.mrb[0].mxu0
    %v875 = vadd.f32 %v721, %v874
    %v876 = vpop.f32.mrb[0].mxu0
    %877 = vmatprep.mubr.bf16.mxu0 0
    %878 = vmatmul.mubr.bf16.gmra.mrb[0].mxu0 %v808
    %v879 = vpop.f32.mrb[0].mxu0
    %v880 = vadd.f32 %v726, %v879
    %v881 = vpop.f32.mrb[0].mxu0
    %v882 = vpop.f32.mrb[0].mxu0
    %v883 = vadd.f32 %v731, %v882
    %v884 = vpop.f32.mrb[0].mxu0
    %885 = vmatprep.mubr.bf16.mxu0 0
    %886 = vmatmul.mubr.bf16.gmra.mrb[0].mxu0 %v809
    %v887 = vpop.f32.mrb[0].mxu0
    %v888 = vadd.f32 %v736, %v887
    %v889 = vpop.f32.mrb[0].mxu0
    %v890 = vpop.f32.mrb[0].mxu0
    %v891 = vadd.f32 %v741, %v890
    %v892 = vpop.f32.mrb[0].mxu0
    %893 = vmatprep.mubr.bf16.mxu0 0
    %894 = vmatmul.mubr.bf16.gmra.mrb[0].mxu0 %v810
    %v895 = vpop.f32.mrb[0].mxu0
    %v896 = vadd.f32 %v746, %v895
    %v897 = vpop.f32.mrb[0].mxu0
    %v898 = vpop.f32.mrb[0].mxu0
    %v899 = vadd.f32 %v751, %v898
    %v900 = vpop.f32.mrb[0].mxu0
    %901 = vmatprep.mubr.bf16.mxu0 0
    %902 = vmatmul.mubr.bf16.gmra.mrb[0].mxu0 %v811
    %v903 = vpop.f32.mrb[0].mxu0
    %v904 = vadd.f32 %v756, %v903
    %v905 = vpop.f32.mrb[0].mxu0
    %v906 = vpop.f32.mrb[0].mxu0
    %v907 = vadd.f32 %v761, %v906
    %v908 = vpop.f32.mrb[0].mxu0
    %909 = vmatprep.mubr.bf16.mxu0 0
    %910 = vmatmul.mubr.bf16.gmra.mrb[0].mxu0 %v812
    %v911 = vpop.f32.mrb[0].mxu0
    %v912 = vadd.f32 %v766, %v911
    %v913 = vpop.f32.mrb[0].mxu0
    %v914 = vpop.f32.mrb[0].mxu0
    %v915 = vadd.f32 %v771, %v914
    %v916 = vpop.f32.mrb[0].mxu0
    %917 = vdwg.mxu0
    %v918 = vmax.f32 %v856, 0.0
    %v919 = vmax.f32 %v859, 0.0
    %v920 = vmax.f32 %v864, 0.0
    %v921 = vmax.f32 %v867, 0.0
    %v922 = vmax.f32 %v872, 0.0
    %v923 = vmax.f32 %v875, 0.0
    %v924 = vmax.f32 %v880, 0.0
    %v925 = vmax.f32 %v883, 0.0
    %v926 = vmax.f32 %v888, 0.0
    %v927 = vmax.f32 %v891, 0.0
    %v928 = vmax.f32 %v896, 0.0
    %v929 = vmax.f32 %v899, 0.0
    %v930 = vmax.f32 %v904, 0.0
    %v931 = vmax.f32 %v907, 0.0
    %v932 = vmax.f32 %v912, 0.0
    %v933 = vmax.f32 %v915, 0.0
    %v934 = vld [vmem:[%s7] sm:$0xff]
    %v935 = vld [vmem:[%s7 + $0x8] sm:$0xff]
    %v936 = vld [vmem:[%s7 + $0x10] sm:$0xff]
    %v937 = vld [vmem:[%s7 + $0x18] sm:$0xff]
    %v938 = vld [vmem:[%s7 + $0x20] sm:$0xff]
    %v939 = vld [vmem:[%s7 + $0x28] sm:$0xff]
    %v940 = vld [vmem:[%s7 + $0x30] sm:$0xff]
    %v941 = vld [vmem:[%s7 + $0x38] sm:$0xff]
    %v942 = vld [vmem:[%s7 + $0x40] sm:$0xff]
    %v943 = vld [vmem:[%s7 + $0x48] sm:$0xff]
    %v944 = vld [vmem:[%s7 + $0x50] sm:$0xff]
    %v945 = vld [vmem:[%s7 + $0x58] sm:$0xff]
    %v946 = vld [vmem:[%s7 + $0x60] sm:$0xff]
    %v947 = vld [vmem:[%s7 + $0x68] sm:$0xff]
    %v948 = vld [vmem:[%s7 + $0x70] sm:$0xff]
    %v949 = vld [vmem:[%s7 + $0x78] sm:$0xff]
    %951 = vset.pattern.permute.xlu0 0
    %952 = vperm.xlu0 %951, %v934
    %v953 = vpop.permute.xlu0 %952
    %956 = vset.pattern.permute.xlu0 0
    %957 = vperm.xlu0 %956, %v935
    %v958 = vpop.permute.xlu0 %957
    %961 = vset.pattern.permute.xlu0 0
    %962 = vperm.xlu0 %961, %v936
    %v963 = vpop.permute.xlu0 %962
    %966 = vset.pattern.permute.xlu0 0
    %967 = vperm.xlu0 %966, %v937
    %v968 = vpop.permute.xlu0 %967
    %971 = vset.pattern.permute.xlu0 0
    %972 = vperm.xlu0 %971, %v938
    %v973 = vpop.permute.xlu0 %972
    %976 = vset.pattern.permute.xlu0 0
    %977 = vperm.xlu0 %976, %v939
    %v978 = vpop.permute.xlu0 %977
    %981 = vset.pattern.permute.xlu0 0
    %982 = vperm.xlu0 %981, %v940
    %v983 = vpop.permute.xlu0 %982
    %986 = vset.pattern.permute.xlu0 0
    %987 = vperm.xlu0 %986, %v941
    %v988 = vpop.permute.xlu0 %987
    %991 = vset.pattern.permute.xlu0 0
    %992 = vperm.xlu0 %991, %v942
    %v993 = vpop.permute.xlu0 %992
    %996 = vset.pattern.permute.xlu0 0
    %997 = vperm.xlu0 %996, %v943
    %v998 = vpop.permute.xlu0 %997
    %1001 = vset.pattern.permute.xlu0 0
    %1002 = vperm.xlu0 %1001, %v944
    %v1003 = vpop.permute.xlu0 %1002
    %1006 = vset.pattern.permute.xlu0 0
    %1007 = vperm.xlu0 %1006, %v945
    %v1008 = vpop.permute.xlu0 %1007
    %1011 = vset.pattern.permute.xlu0 0
    %1012 = vperm.xlu0 %1011, %v946
    %v1013 = vpop.permute.xlu0 %1012
    %1016 = vset.pattern.permute.xlu0 0
    %1017 = vperm.xlu0 %1016, %v947
    %v1018 = vpop.permute.xlu0 %1017
    %1021 = vset.pattern.permute.xlu0 0
    %1022 = vperm.xlu0 %1021, %v948
    %v1023 = vpop.permute.xlu0 %1022
    %1026 = vset.pattern.permute.xlu0 0
    %1027 = vperm.xlu0 %1026, %v949
    %v1028 = vpop.permute.xlu0 %1027
    %v1030 = vmul.f32 %v918, %v953
    %v1031 = vmul.f32 %v919, %v958
    %v1032 = vmul.f32 %v920, %v963
    %v1033 = vmul.f32 %v921, %v968
    %v1034 = vmul.f32 %v922, %v973
    %v1035 = vmul.f32 %v923, %v978
    %v1036 = vmul.f32 %v924, %v983
    %v1037 = vmul.f32 %v925, %v988
    %v1038 = vmul.f32 %v926, %v993
    %v1039 = vmul.f32 %v927, %v998
    %v1040 = vmul.f32 %v928, %v1003
    %v1041 = vmul.f32 %v929, %v1008
    %v1042 = vmul.f32 %v930, %v1013
    %v1043 = vmul.f32 %v931, %v1018
    %v1044 = vmul.f32 %v932, %v1023
    %v1045 = vmul.f32 %v933, %v1028
    %v1046 = vadd.f32 %v1030, %v1031
    %v1047 = vadd.f32 %v1046, %v1032
    %v1048 = vadd.f32 %v1047, %v1033
    %v1049 = vadd.f32 %v1048, %v1034
    %v1050 = vadd.f32 %v1049, %v1035
    %v1051 = vadd.f32 %v1050, %v1036
    %v1052 = vadd.f32 %v1051, %v1037
    %v1053 = vadd.f32 %v1052, %v1038
    %v1054 = vadd.f32 %v1053, %v1039
    %v1055 = vadd.f32 %v1054, %v1040
    %v1056 = vadd.f32 %v1055, %v1041
    %v1057 = vadd.f32 %v1056, %v1042
    %v1058 = vadd.f32 %v1057, %v1043
    %v1059 = vadd.f32 %v1058, %v1044
    %v1060 = vadd.f32 %v1059, %v1045
    %v1061 = vrot.slane %v1060, 4
    %v1062 = vadd.f32 %v1060, %v1061
    %v1063 = vrot.slane %v1062, 2
    %v1064 = vadd.f32 %v1062, %v1063
    %v1065 = vrot.slane %v1064, 1
    %v1066 = vadd.f32 %v1064, %v1065
    %s1067 = sld [smem:[#allocation2]]
    %v1068 = vstv %s1067
    %v1069 = vadd.f32 %v1066, %v1068
    %v1070 = vmax.f32 %v1069, -40.0
    %v1071 = vmin.f32 %v1070, 40.0
    %v1072 = vsub.f32 0.0, %v1071
    %v1073 = vmul.f32 %v1072, 1.442695
    %v1074 = vpow.pop %v1073
    %v1075 = vadd.f32 %v1074, 1.0
    %v1076 = vrcp.pop %v1075
    %1077 = vst [vmem:[#allocation3] sm:$0x1] %v1076
    // Predicated region
    $region38: #{tpu_custom_call.1} parent=1 // pred_check
      _
    $region39: #{tpu_custom_call.1} parent=1 // pred_check_branch
      %1079 = sbr.rel (0) target = $region41
    $region40: #{tpu_custom_call.1} parent=1 // pred_region
      %s1081 = ssub.s32 16, 16
      %1082 = vsyncadd [#allocation4], %s1081
      %s1084 = sshll.u32 [#allocation3], 4
      %s1085 = int_to_ptr.vmem [resolvable:$true] %s1084
      %1087 = dma.vmem_to_hbm [thread:$0]  %s1085, 16, %s9, [#allocation4]
    $region41: #{tpu_custom_call.1} parent=1 // pred_fallthru
      _
    // Predicated region
    $region42: #{tpu_custom_call.1} parent=1 // pred_check
      _
    $region43: #{tpu_custom_call.1} parent=1 // pred_check_branch
      %1089 = sbr.rel (0) target = $region45
    $region44: #{tpu_custom_call.1} parent=1 // pred_region
      %1090 = dma.done [#allocation4], 16
    $region45: #{tpu_custom_call.1} parent=1 // pred_fallthru
      _
    %1091 = vsyncpa [#allocation4], 1

</llo_original>
